<compile_context>
chip_gen: v7x
topology: tpu7x:2x2x1
jax: 0.10.0
libtpu: 0.0.40
codegen_flags: <defaults>
</compile_context>

<pallas_src>
import jax
import jax.numpy as jnp
from jax.experimental import pallas as pl
from jax.experimental.pallas import tpu as pltpu


def net_kernel(x_ref, p_ref, o_ref):
    x = x_ref[...]                       # (4, Bt)  features on sublanes, batch on lanes
    w1 = p_ref[:, 0:4]                   # (24, 4)  FC1.weight; rows 20..23 are zero
    b1 = p_ref[:, 4:5]                   # (24, 1)  FC1.bias column
    w2d = p_ref[:, 5:6]                  # (24, 1)  FC2.w[0,:] - FC2.w[1,:]
    b2d = p_ref[0:1, 6:7]                # (1, 1)   FC2.b[0] - FC2.b[1]

    # FC1 on the VPU: K=4 unrolled outer-product broadcast-FMAs (no MXU).
    h = (w1[:, 0:1] * x[0:1, :]
         + w1[:, 1:2] * x[1:2, :]
         + w1[:, 2:3] * x[2:3, :]
         + w1[:, 3:4] * x[3:4, :]
         + b1)                           # (24, Bt); rows >= 20 are exactly 0

    # FC2 + softmax over 2 classes == sigmoid of the logit difference:
    #   d = z0 - z1 = sum_j h[j] * w2d[j] + b2d      (short sublane reduce)
    d = jnp.sum(h * w2d, axis=0, keepdims=True) + b2d    # (1, Bt)
    p0 = jax.nn.sigmoid(d)                                # == softmax[:, 0], exp on EUP
    # Write the two output rows directly (lane-dense stores, no concat).
    o_ref[0:1, :] = p0
    o_ref[1:2, :] = 1.0 - p0


def pack_params(w1, b1, w2, b2):
    """Pack FC1/FC2 params into one tile-aligned (24, 128) f32 slab (built once).

    Args follow the JAX-reference layout: w1=(4,20)=FC1.weight.T, b1=(1,20),
    w2=(20,2)=FC2.weight.T, b2=(1,2).
    """
    slab = jnp.zeros((24, 128), jnp.float32)
    slab = slab.at[0:20, 0:4].set(w1.astype(jnp.float32).T)           # FC1.weight (20,4)
    slab = slab.at[0:20, 4].set(b1.reshape(20).astype(jnp.float32))   # FC1.bias
    slab = slab.at[0:20, 5].set((w2[:, 0] - w2[:, 1]).astype(jnp.float32))
    slab = slab.at[0, 6].set(
        (b2.reshape(2)[0] - b2.reshape(2)[1]).astype(jnp.float32))
    return slab


def net_forward(x, param_slab, *, block_b=512):
    """x: (B, 4) float32 (PyTorch layout). Returns softmax probs (B, 2)."""
    assert block_b % 128 == 0, "batch tile must be lane-aligned (multiple of 128)"
    B = x.shape[0]
    Bt = int(block_b)
    B_pad = ((B + Bt - 1) // Bt) * Bt

    # Lane-dense layout: batch on lanes. Pad with zero rows (sliced off below).
    x_t = jnp.zeros((4, B_pad), jnp.float32)
    x_t = x_t.at[:, :B].set(x.astype(jnp.float32).T)

    out_t = pl.pallas_call(
        net_kernel,
        out_shape=jax.ShapeDtypeStruct((2, B_pad), jnp.float32),
        grid=(B_pad // Bt,),
        in_specs=[
            pl.BlockSpec((4, Bt), lambda i: (0, i)),        # streamed batch tiles
            pl.BlockSpec((24, 128), lambda i: (0, 0)),      # param slab: VMEM-resident
        ],
        out_specs=pl.BlockSpec((2, Bt), lambda i: (0, i)),  # lane-dense output tiles
        compiler_params=pltpu.CompilerParams(
            dimension_semantics=("parallel",)),             # 2-TC sharding on v7x
    )(x_t, param_slab)

    return out_t[:, :B].T                                   # back to (B, 2)


def init_params(key):
    # Deterministic init mimicking nn.Linear's uniform(-1/sqrt(fan_in), ...).
    k1, k2, k3, k4 = jax.random.split(key, 4)
    lim1 = 1.0 / jnp.sqrt(4.0)
    lim2 = 1.0 / jnp.sqrt(20.0)
    w1 = jax.random.uniform(k1, (4, 20), jnp.float32, -lim1, lim1)   # FC1.weight.T
    b1 = jax.random.uniform(k2, (1, 20), jnp.float32, -lim1, lim1)   # FC1.bias
    w2 = jax.random.uniform(k3, (20, 2), jnp.float32, -lim2, lim2)   # FC2.weight.T
    b2 = jax.random.uniform(k4, (1, 2), jnp.float32, -lim2, lim2)    # FC2.bias
    return w1, b1, w2, b2


if __name__ == "__main__":
    key = jax.random.PRNGKey(0)
    kx, kp = jax.random.split(key)

    # Batch many envs / rollout timesteps together so the per-call fixed
    # overhead is amortized across a pipelined grid (perf-review item #1).
    # B is intentionally NOT a multiple of the tile to exercise the pad path.
    B = 2000
    x = jax.random.normal(kx, (B, 4), jnp.float32)   # CartPole obs: 4 features
    w1, b1, w2, b2 = init_params(kp)

    # Slab is built once and reused across every policy evaluation.
    slab = pack_params(w1, b1, w2, b2)

    out = jax.block_until_ready(net_forward(x, slab, block_b=512))

    # Sanity check against plain-JAX reference (exact softmax form, no ReLU —
    # matching the original PyTorch Net.forward).
    ref = jax.nn.softmax((x @ w1 + b1) @ w2 + b2, axis=1)
    assert out.shape == (B, 2)
    assert jnp.allclose(out, ref, atol=1e-5), "mismatch vs reference"
    assert jnp.allclose(out.sum(axis=1), 1.0, atol=1e-5), "rows must sum to 1"

    print("KERNEL_OK")
</pallas_src>

<mosaic_0001>
module attributes {stable_mosaic.version = 11 : i64} {
  func.func @net_kernel(%arg0: i32, %arg1: memref<4x512xf32, #tpu.memory_space<vmem>>, %arg2: memref<24x128xf32, #tpu.memory_space<vmem>>, %arg3: memref<2x512xf32, #tpu.memory_space<vmem>>) attributes {dimension_semantics = [#tpu.dimension_semantics<parallel>], iteration_bounds = array<i64: 4>, scalar_prefetch = 0 : i64, scratch_operands = 0 : i64, tpu.core_type = #tpu.core_type<tc>, window_params = [{transform_indices = @transform_0, window_bounds = array<i64: 4, 512>}, {pipeline_mode = #tpu.pipeline_mode<synchronous>, transform_indices = @transform_1, window_bounds = array<i64: 24, 128>}, {transform_indices = @transform_2, window_bounds = array<i64: 2, 512>}]} {
    %c0 = arith.constant 0 : index
    %c0_0 = arith.constant 0 : index
    %0 = vector.load %arg1[%c0, %c0_0] : memref<4x512xf32, #tpu.memory_space<vmem>>, vector<4x512xf32>
    %c0_1 = arith.constant 0 : index
    %c0_2 = arith.constant 0 : index
    %1 = vector.load %arg2[%c0_1, %c0_2] : memref<24x128xf32, #tpu.memory_space<vmem>>, vector<24x4xf32>
    %c0_3 = arith.constant 0 : index
    %c4 = arith.constant 4 : index
    %2 = vector.load %arg2[%c0_3, %c4] : memref<24x128xf32, #tpu.memory_space<vmem>>, vector<24x1xf32>
    %c0_4 = arith.constant 0 : index
    %c5 = arith.constant 5 : index
    %3 = vector.load %arg2[%c0_4, %c5] : memref<24x128xf32, #tpu.memory_space<vmem>>, vector<24x1xf32>
    %c0_5 = arith.constant 0 : index
    %c6 = arith.constant 6 : index
    %4 = vector.load %arg2[%c0_5, %c6] : memref<24x128xf32, #tpu.memory_space<vmem>>, vector<1x1xf32>
    %5 = vector.extract_strided_slice %1 {offsets = [0, 0], sizes = [24, 1], strides = [1, 1]} : vector<24x4xf32> to vector<24x1xf32>
    %6 = vector.extract_strided_slice %0 {offsets = [0, 0], sizes = [1, 512], strides = [1, 1]} : vector<4x512xf32> to vector<1x512xf32>
    %7 = vector.broadcast %5 : vector<24x1xf32> to vector<24x512xf32>
    %8 = vector.broadcast %6 : vector<1x512xf32> to vector<24x512xf32>
    %9 = arith.mulf %7, %8 : vector<24x512xf32>
    %10 = vector.extract_strided_slice %1 {offsets = [0, 1], sizes = [24, 1], strides = [1, 1]} : vector<24x4xf32> to vector<24x1xf32>
    %11 = vector.extract_strided_slice %0 {offsets = [1, 0], sizes = [1, 512], strides = [1, 1]} : vector<4x512xf32> to vector<1x512xf32>
    %12 = vector.broadcast %10 : vector<24x1xf32> to vector<24x512xf32>
    %13 = vector.broadcast %11 : vector<1x512xf32> to vector<24x512xf32>
    %14 = arith.mulf %12, %13 : vector<24x512xf32>
    %15 = arith.addf %9, %14 : vector<24x512xf32>
    %16 = vector.extract_strided_slice %1 {offsets = [0, 2], sizes = [24, 1], strides = [1, 1]} : vector<24x4xf32> to vector<24x1xf32>
    %17 = vector.extract_strided_slice %0 {offsets = [2, 0], sizes = [1, 512], strides = [1, 1]} : vector<4x512xf32> to vector<1x512xf32>
    %18 = vector.broadcast %16 : vector<24x1xf32> to vector<24x512xf32>
    %19 = vector.broadcast %17 : vector<1x512xf32> to vector<24x512xf32>
    %20 = arith.mulf %18, %19 : vector<24x512xf32>
    %21 = arith.addf %15, %20 : vector<24x512xf32>
    %22 = vector.extract_strided_slice %1 {offsets = [0, 3], sizes = [24, 1], strides = [1, 1]} : vector<24x4xf32> to vector<24x1xf32>
    %23 = vector.extract_strided_slice %0 {offsets = [3, 0], sizes = [1, 512], strides = [1, 1]} : vector<4x512xf32> to vector<1x512xf32>
    %24 = vector.broadcast %22 : vector<24x1xf32> to vector<24x512xf32>
    %25 = vector.broadcast %23 : vector<1x512xf32> to vector<24x512xf32>
    %26 = arith.mulf %24, %25 : vector<24x512xf32>
    %27 = arith.addf %21, %26 : vector<24x512xf32>
    %28 = vector.broadcast %2 : vector<24x1xf32> to vector<24x512xf32>
    %29 = arith.addf %27, %28 : vector<24x512xf32>
    %30 = vector.broadcast %3 : vector<24x1xf32> to vector<24x512xf32>
    %31 = arith.mulf %29, %30 : vector<24x512xf32>
    %cst = arith.constant dense<0.000000e+00> : vector<512xf32>
    %32 = vector.multi_reduction <add>, %31, %cst [0] : vector<24x512xf32> to vector<512xf32>
    %33 = vector.shape_cast %32 : vector<512xf32> to vector<1x512xf32>
    %34 = vector.broadcast %4 : vector<1x1xf32> to vector<1x512xf32>
    %35 = arith.addf %33, %34 : vector<1x512xf32>
    %36 = arith.negf %35 : vector<1x512xf32>
    %37 = math.exp %36 : vector<1x512xf32>
    %cst_6 = arith.constant 1.000000e+00 : f32
    %38 = vector.broadcast %cst_6 : f32 to vector<1x512xf32>
    %39 = arith.addf %38, %37 : vector<1x512xf32>
    %40 = arith.divf %38, %39 : vector<1x512xf32>
    %c0_7 = arith.constant 0 : index
    %c0_8 = arith.constant 0 : index
    %41 = vector.load %arg3[%c0_7, %c0_8] : memref<2x512xf32, #tpu.memory_space<vmem>>, vector<1x512xf32>
    tpu.vector_store %arg3[%c0_7, %c0_8], %40 {strides = array<i32>} : memref<2x512xf32, #tpu.memory_space<vmem>>, vector<1x512xf32>,
    %cst_9 = arith.constant 1.000000e+00 : f32
    %42 = vector.broadcast %cst_9 : f32 to vector<1x512xf32>
    %43 = arith.subf %42, %40 : vector<1x512xf32>
    %c1 = arith.constant 1 : index
    %c0_10 = arith.constant 0 : index
    %44 = vector.load %arg3[%c1, %c0_10] : memref<2x512xf32, #tpu.memory_space<vmem>>, vector<1x512xf32>
    tpu.vector_store %arg3[%c1, %c0_10], %43 {strides = array<i32>} : memref<2x512xf32, #tpu.memory_space<vmem>>, vector<1x512xf32>,
    return
  }
  func.func @transform_0(%arg0: i32) -> (i32, i32) {
    %c0_i32 = arith.constant 0 : i32
    %c0_i32_0 = arith.constant 0 : i32
    return %c0_i32, %arg0 : i32, i32
  }
  func.func @transform_1(%arg0: i32) -> (i32, i32) {
    %c0_i32 = arith.constant 0 : i32
    %c0_i32_0 = arith.constant 0 : i32
    %c0_i32_1 = arith.constant 0 : i32
    return %c0_i32, %c0_i32_0 : i32, i32
  }
  func.func @transform_2(%arg0: i32) -> (i32, i32) {
    %c0_i32 = arith.constant 0 : i32
    %c0_i32_0 = arith.constant 0 : i32
    return %c0_i32, %arg0 : i32, i32
  }
}

</mosaic_0001>

<llo_original>
// kernel: tpu_custom_call.1
$region0: #{tpu_custom_call.1}
  #allocation0 [shape = 'u32[]', space=smem, size = 0x4, offset = 0x4, fixed_abs, tag = 'smem constant byte address 0x4 - core index']
  #allocation1 [shape = 'u32[144,128]{1,0:T(1,128)}', space=vmem, size = 0x12000, scoped, tag = 'internal scratch']
  %s0 = inlined_call_operand.hbm [shape: f32[4,2048], index: 0, kind: input, shape index: {}]
  %s1 = inlined_call_operand.hbm [shape: f32[24,128], index: 1, kind: input, shape index: {}]
  %s2 = inlined_call_operand.hbm [shape: f32[2,2048], index: 2, kind: output, shape index: {}]
  %s3 = sld [smem:[#allocation0]]
  $region49: #{tpu_custom_call.1} parent=0
    _
  %s5 = ssub.s32 1, %s3
  %s6 = scalar_select 0, %s5, %s3
  $region1: #{tpu_custom_call.1} parent=0
    #allocation2 [shape = 'u8[16384]{0}', space=vmem, size = 0x4000, scoped, tag = 'input window, operand 0']
    #allocation3 [shape = 's32[2]{0}', space=sflag, size = 0x8, scoped, tag = 'scoped memory for tpu_custom_call.1']
    #allocation4 [shape = 's32[2]{0}', space=sflag, size = 0x8, scoped, tag = 'scoped memory for tpu_custom_call.1']
    #allocation5 [shape = 'u8[12288]{0}', space=vmem, size = 0x3000, scoped, tag = 'input window, operand 1, single buffered']
    #allocation6 [shape = 's32[1]{0}', space=sflag, size = 0x4, scoped, tag = 'scoped memory for tpu_custom_call.1']
    #allocation7 [shape = 'u8[8192]{0}', space=vmem, size = 0x2000, scoped, tag = 'output window, operand 0']
    %7 = vsyncpa [#allocation3], 0
    %s8 = scalar_lea.sflag [#allocation3], 1
    %9 = vsyncpa %s8, 0
    %10 = vsyncpa [#allocation6], 0
    %11 = vsyncpa [#allocation4], 0
    %s12 = scalar_lea.sflag [#allocation4], 1
    %13 = vsyncpa %s12, 0
    loop: start=0, step=1, limit=6
    $region2: #{tpu_custom_call.1} parent=1 // loop_pre_header
      _
    $region3: #{tpu_custom_call.1} parent=1 // loop_header
      %s15 = sphi 0, %s19
      %p16 = scmp.ge.s32.totalorder %s15, 6
      %s25 = sphi 0, %s27
      %s28 = sphi 0, %s25
      %s29 = sphi 0, %s28
      %s45 = sphi 0, %s29
      %s49 = sphi 0, %s49
      %s51 = sphi 0, %s49
      %s52 = sphi 0, %s51
      %s66 = sphi 0, %s52
      %s72 = sphi 0, %s74
      %s75 = sphi 0, %s72
      %s76 = sphi 0, %s75
      %s92 = sphi 0, %s76
    $region4: #{tpu_custom_call.1} parent=1 // loop_header_branch
      %18 = sbr.rel (%p16) target = $region8
    $region5: #{tpu_custom_call.1} parent=1 // loop_body
      %s20 = ssub.s32 %s15, 1
      %s21 = ssub.s32 %s15, 2
      %s22 = sadd.s32 %s15, 1
      %s23 = ssub.s32 %s15, %s22
      %p24 = scmp.eq.s32.totalorder %s23, 0
      %s26 = sadd.s32 %s25, 1
      %s27 = scalar_select %p24, %s25, %s26
      %p30 = pneg %p24
      %p31 = scmp.eq.s32.totalorder %s15, 3
      %p32 = por %p30, %p31
      %p33 = scmp.ne.s32.totalorder %s25, %s28
      %p34 = scmp.eq.s32.totalorder %s15, 0
      %p35 = por %p33, %p34
      %p36 = scmp.ne.s32.totalorder %s25, %s28
      %p37 = scmp.eq.s32.totalorder %s20, 3
      %p38 = por %p36, %p37
      %p39 = scmp.ne.s32.totalorder %s28, %s29
      %p40 = scmp.eq.s32.totalorder %s20, 0
      %p41 = por %p39, %p40
      %p42 = scmp.ne.s32.totalorder %s28, %s29
      %p43 = scmp.eq.s32.totalorder %s21, 3
      %p44 = por %p42, %p43
      %p46 = scmp.ne.s32.totalorder %s29, %s45
      %p47 = scmp.eq.s32.totalorder %s21, 0
      %p48 = por %p46, %p47
      %s50 = sadd.s32 %s49, 1
      %p53 = scmp.eq.s32.totalorder %s15, 3
      %p54 = scmp.ne.s32.totalorder %s49, %s51
      %p55 = scmp.eq.s32.totalorder %s15, 0
      %p56 = por %p54, %p55
      %p57 = scmp.ne.s32.totalorder %s49, %s51
      %p58 = scmp.eq.s32.totalorder %s20, 3
      %p59 = por %p57, %p58
      %p60 = scmp.ne.s32.totalorder %s51, %s52
      %p61 = scmp.eq.s32.totalorder %s20, 0
      %p62 = por %p60, %p61
      %p63 = scmp.ne.s32.totalorder %s51, %s52
      %p64 = scmp.eq.s32.totalorder %s21, 3
      %p65 = por %p63, %p64
      %p67 = scmp.ne.s32.totalorder %s52, %s66
      %p68 = scmp.eq.s32.totalorder %s21, 0
      %p69 = por %p67, %p68
      %s70 = ssub.s32 %s15, %s22
      %p71 = scmp.eq.s32.totalorder %s70, 0
      %s73 = sadd.s32 %s72, 1
      %s74 = scalar_select %p71, %s72, %s73
      %p77 = pneg %p71
      %p78 = scmp.eq.s32.totalorder %s15, 3
      %p79 = por %p77, %p78
      %p80 = scmp.ne.s32.totalorder %s72, %s75
      %p81 = scmp.eq.s32.totalorder %s15, 0
      %p82 = por %p80, %p81
      %p83 = scmp.ne.s32.totalorder %s72, %s75
      %p84 = scmp.eq.s32.totalorder %s20, 3
      %p85 = por %p83, %p84
      %p86 = scmp.ne.s32.totalorder %s75, %s76
      %p87 = scmp.eq.s32.totalorder %s20, 0
      %p88 = por %p86, %p87
      %p89 = scmp.ne.s32.totalorder %s75, %s76
      %p90 = scmp.eq.s32.totalorder %s21, 3
      %p91 = por %p89, %p90
      %p93 = scmp.ne.s32.totalorder %s76, %s92
      %p94 = scmp.eq.s32.totalorder %s21, 0
      %p95 = por %p93, %p94
      %p96 = scmp.le.s32.totalorder 1, %s15
      %p97 = scmp.lt.s32.totalorder %s15, 5
      %p98 = pnand %p96, %p97
      %p99 = pneg %p98
      // Predicated region
      $region9: #{tpu_custom_call.1} parent=5 // pred_check
        _
      $region10: #{tpu_custom_call.1} parent=5 // pred_check_branch
        %101 = sbr.rel (%p98) target = $region12
      $region11: #{tpu_custom_call.1} parent=5 // pred_region
        %s102 = ssub.s32 %s15, 1
        // Predicated region
        $region13: #{tpu_custom_call.1} parent=11 // pred_check
          %p103 = pneg %p62
        $region14: #{tpu_custom_call.1} parent=11 // pred_check_branch
          %105 = sbr.rel (%p103) target = $region16
        $region15: #{tpu_custom_call.1} parent=11 // pred_region
          %s107 = ssub.s32 384, 384
          %108 = vsyncadd [#allocation6], %s107
          %s109 = sshll.u32 [#allocation5], 4
          %s110 = int_to_ptr.vmem [resolvable:$true] %s109
          %115 = dma.hbm_to_vmem [thread:$0]  %s1, 384, %s110, [#allocation6], 128, 128, 8
        $region16: #{tpu_custom_call.1} parent=11 // pred_fallthru
          _
      $region12: #{tpu_custom_call.1} parent=5 // pred_fallthru
        _
      %p116 = scmp.lt.s32.totalorder %s15, 4
      // Predicated region
      $region17: #{tpu_custom_call.1} parent=5 // pred_check
        %p117 = pneg %p116
      $region18: #{tpu_custom_call.1} parent=5 // pred_check_branch
        %119 = sbr.rel (%p117) target = $region20
      $region19: #{tpu_custom_call.1} parent=5 // pred_region
        // Predicated region
        $region21: #{tpu_custom_call.1} parent=19 // pred_check
          %p120 = pneg %p35
        $region22: #{tpu_custom_call.1} parent=19 // pred_check_branch
          %122 = sbr.rel (%p120) target = $region24
        $region23: #{tpu_custom_call.1} parent=19 // pred_region
          %s123 = sand.u32 %s25, 1
          %s124 = scalar_lea.sflag [#allocation3], %s123
          %s125 = sand.u32 %s25, 1
          %s126 = smul.addr %s125, 16
          %s127 = scalar_lea.vmem [#allocation2], %s126
          %s128 = smul.u32 4, %s15
          %s130 = ssub.s32 256, 256
          %131 = vsyncadd %s124, %s130
          %s132 = smul.addr %s128, 64
          %s133 = scalar_lea.hbm %s0, %s132
          %s135 = sshll.u32 %s127, 4
          %s136 = int_to_ptr.vmem [resolvable:$true] %s135
          %138 = dma.hbm_to_vmem [thread:$0]  %s133, 256, %s136, %s124
        $region24: #{tpu_custom_call.1} parent=19 // pred_fallthru
          _
      $region20: #{tpu_custom_call.1} parent=5 // pred_fallthru
        _
      %p139 = scmp.le.s32.totalorder 1, %s15
      %p140 = scmp.lt.s32.totalorder %s15, 5
      %p141 = pnand %p139, %p140
      %p142 = pneg %p141
      // Predicated region
      $region25: #{tpu_custom_call.1} parent=5 // pred_check
        _
      $region26: #{tpu_custom_call.1} parent=5 // pred_check_branch
        %144 = sbr.rel (%p141) target = $region28
      $region27: #{tpu_custom_call.1} parent=5 // pred_region
        %s145 = ssub.s32 %s15, 1
        %s146 = sand.u32 %s28, 1
        %s147 = scalar_lea.sflag [#allocation3], %s146
        %s148 = sand.u32 %s28, 1
        %s149 = smul.addr %s148, 16
        %s150 = scalar_lea.vmem [#allocation2], %s149
        // Predicated region
        $region29: #{tpu_custom_call.1} parent=27 // pred_check
          %p151 = pneg %p41
        $region30: #{tpu_custom_call.1} parent=27 // pred_check_branch
          %153 = sbr.rel (%p151) target = $region32
        $region31: #{tpu_custom_call.1} parent=27 // pred_region
          %154 = dma.done %s147, 256
        $region32: #{tpu_custom_call.1} parent=27 // pred_fallthru
          _
        // Predicated region
        $region33: #{tpu_custom_call.1} parent=27 // pred_check
          %p155 = pneg %p62
        $region34: #{tpu_custom_call.1} parent=27 // pred_check_branch
          %157 = sbr.rel (%p155) target = $region36
        $region35: #{tpu_custom_call.1} parent=27 // pred_region
          %158 = dma.done [#allocation6], 384
        $region36: #{tpu_custom_call.1} parent=27 // pred_fallthru
          _
        %s159 = sand.u32 %s28, 1
        %s160 = scalar_lea.sflag [#allocation3], %s159
        %s161 = sand.u32 %s28, 1
        %s162 = smul.addr %s161, 16
        %s163 = scalar_lea.vmem [#allocation2], %s162
        %p164 = pneg %p41
        %p165 = pneg %p38
        %p166 = pneg %p62
        %p167 = pneg %p59
        %p168 = pneg %p88
        %p169 = pneg %p85
        %s170 = sand.u32 %s75, 1
        %s171 = scalar_lea.sflag [#allocation4], %s170
        %s172 = sand.u32 %s75, 1
        %s173 = smul.addr %s172, 8
        %s174 = scalar_lea.vmem [#allocation7], %s173
        %s175 = smul.u32 4, %s20
        %s176 = smul.u32 4, %s20
        %v177 = vld [vmem:[%s150] sm:$0xff]
        %v178 = vld [vmem:[%s150 + $0x8] sm:$0xff]
        %v179 = vld [vmem:[#allocation5] sm:$0xff]
        %v180 = vld [vmem:[#allocation5 + $0x8] sm:$0xff]
        %v181 = vld [vmem:[#allocation5 + $0x10] sm:$0xff]
        %v182 = vld [vmem:[#allocation5] sm:$0x1]
        %184 = vset.pattern.permute.xlu0 0
        %185 = vperm.xlu0 %184, %v179
        %v186 = vpop.permute.xlu0 %185
        %189 = vset.pattern.permute.xlu0 0
        %190 = vperm.xlu0 %189, %v180
        %v191 = vpop.permute.xlu0 %190
        %194 = vset.pattern.permute.xlu0 0
        %195 = vperm.xlu0 %194, %v181
        %v196 = vpop.permute.xlu0 %195
        %v200 = vlaneseq
        %v201 = vshrl.u32 %v200, 7
        %v202 = vsub.s32 0, %v201
        %v203 = vrot.slane %v177, %v202
        %v204 = vlaneseq
        %v205 = vshrl.u32 %v204, 7
        %v206 = vsub.s32 4, %v205
        %v207 = vrot.slane %v177, %v206
        %v208 = vlaneseq
        %v209 = vshrl.u32 %v208, 7
        %v210 = vsub.s32 0, %v209
        %v211 = vrot.slane %v178, %v210
        %v212 = vlaneseq
        %v213 = vshrl.u32 %v212, 7
        %v214 = vsub.s32 4, %v213
        %v215 = vrot.slane %v178, %v214
        %v220 = vlaneseq
        %v221 = vshrl.u32 %v220, 7
        %v222 = vsub.s32 0, %v221
        %v223 = vrot.slane %v203, %v222
        %v224 = vlaneseq
        %v225 = vshrl.u32 %v224, 7
        %v226 = vsub.s32 0, %v225
        %v227 = vrot.slane %v207, %v226
        %v228 = vlaneseq
        %v229 = vshrl.u32 %v228, 7
        %v230 = vsub.s32 0, %v229
        %v231 = vrot.slane %v211, %v230
        %v232 = vlaneseq
        %v233 = vshrl.u32 %v232, 7
        %v234 = vsub.s32 0, %v233
        %v235 = vrot.slane %v215, %v234
        %v236 = vmul.f32 %v186, %v223
        %v237 = vmul.f32 %v186, %v227
        %v238 = vmul.f32 %v186, %v231
        %v239 = vmul.f32 %v186, %v235
        %v240 = vmul.f32 %v191, %v223
        %v241 = vmul.f32 %v191, %v227
        %v242 = vmul.f32 %v191, %v231
        %v243 = vmul.f32 %v191, %v235
        %v244 = vmul.f32 %v196, %v223
        %v245 = vmul.f32 %v196, %v227
        %v246 = vmul.f32 %v196, %v231
        %v247 = vmul.f32 %v196, %v235
        %248 = vset.pattern.permute.xlu0 1
        %249 = vperm.xlu0 %248, %v179
        %v250 = vpop.permute.xlu0 %249
        %252 = vset.pattern.permute.xlu0 1
        %253 = vperm.xlu0 %252, %v180
        %v254 = vpop.permute.xlu0 %253
        %256 = vset.pattern.permute.xlu0 1
        %257 = vperm.xlu0 %256, %v181
        %v258 = vpop.permute.xlu0 %257
        %v260 = vlaneseq
        %v261 = vshrl.u32 %v260, 7
        %v262 = vsub.s32 1, %v261
        %v263 = vrot.slane %v177, %v262
        %v264 = vlaneseq
        %v265 = vshrl.u32 %v264, 7
        %v266 = vsub.s32 5, %v265
        %v267 = vrot.slane %v177, %v266
        %v268 = vlaneseq
        %v269 = vshrl.u32 %v268, 7
        %v270 = vsub.s32 1, %v269
        %v271 = vrot.slane %v178, %v270
        %v272 = vlaneseq
        %v273 = vshrl.u32 %v272, 7
        %v274 = vsub.s32 5, %v273
        %v275 = vrot.slane %v178, %v274
        %v280 = vlaneseq
        %v281 = vshrl.u32 %v280, 7
        %v282 = vsub.s32 1, %v281
        %v283 = vrot.slane %v263, %v282
        %v284 = vlaneseq
        %v285 = vshrl.u32 %v284, 7
        %v286 = vsub.s32 1, %v285
        %v287 = vrot.slane %v267, %v286
        %v288 = vlaneseq
        %v289 = vshrl.u32 %v288, 7
        %v290 = vsub.s32 1, %v289
        %v291 = vrot.slane %v271, %v290
        %v292 = vlaneseq
        %v293 = vshrl.u32 %v292, 7
        %v294 = vsub.s32 1, %v293
        %v295 = vrot.slane %v275, %v294
        %v296 = vmul.f32 %v250, %v283
        %v297 = vmul.f32 %v250, %v287
        %v298 = vmul.f32 %v250, %v291
        %v299 = vmul.f32 %v250, %v295
        %v300 = vmul.f32 %v254, %v283
        %v301 = vmul.f32 %v254, %v287
        %v302 = vmul.f32 %v254, %v291
        %v303 = vmul.f32 %v254, %v295
        %v304 = vmul.f32 %v258, %v283
        %v305 = vmul.f32 %v258, %v287
        %v306 = vmul.f32 %v258, %v291
        %v307 = vmul.f32 %v258, %v295
        %v308 = vadd.f32 %v236, %v296
        %v309 = vadd.f32 %v237, %v297
        %v310 = vadd.f32 %v238, %v298
        %v311 = vadd.f32 %v239, %v299
        %v312 = vadd.f32 %v240, %v300
        %v313 = vadd.f32 %v241, %v301
        %v314 = vadd.f32 %v242, %v302
        %v315 = vadd.f32 %v243, %v303
        %v316 = vadd.f32 %v244, %v304
        %v317 = vadd.f32 %v245, %v305
        %v318 = vadd.f32 %v246, %v306
        %v319 = vadd.f32 %v247, %v307
        %320 = vset.pattern.permute.xlu0 2
        %321 = vperm.xlu0 %320, %v179
        %v322 = vpop.permute.xlu0 %321
        %324 = vset.pattern.permute.xlu0 2
        %325 = vperm.xlu0 %324, %v180
        %v326 = vpop.permute.xlu0 %325
        %328 = vset.pattern.permute.xlu0 2
        %329 = vperm.xlu0 %328, %v181
        %v330 = vpop.permute.xlu0 %329
        %v332 = vlaneseq
        %v333 = vshrl.u32 %v332, 7
        %v334 = vsub.s32 2, %v333
        %v335 = vrot.slane %v177, %v334
        %v336 = vlaneseq
        %v337 = vshrl.u32 %v336, 7
        %v338 = vsub.s32 6, %v337
        %v339 = vrot.slane %v177, %v338
        %v340 = vlaneseq
        %v341 = vshrl.u32 %v340, 7
        %v342 = vsub.s32 2, %v341
        %v343 = vrot.slane %v178, %v342
        %v344 = vlaneseq
        %v345 = vshrl.u32 %v344, 7
        %v346 = vsub.s32 6, %v345
        %v347 = vrot.slane %v178, %v346
        %v352 = vlaneseq
        %v353 = vshrl.u32 %v352, 7
        %v354 = vsub.s32 2, %v353
        %v355 = vrot.slane %v335, %v354
        %v356 = vlaneseq
        %v357 = vshrl.u32 %v356, 7
        %v358 = vsub.s32 2, %v357
        %v359 = vrot.slane %v339, %v358
        %v360 = vlaneseq
        %v361 = vshrl.u32 %v360, 7
        %v362 = vsub.s32 2, %v361
        %v363 = vrot.slane %v343, %v362
        %v364 = vlaneseq
        %v365 = vshrl.u32 %v364, 7
        %v366 = vsub.s32 2, %v365
        %v367 = vrot.slane %v347, %v366
        %v368 = vmul.f32 %v322, %v355
        %v369 = vmul.f32 %v322, %v359
        %v370 = vmul.f32 %v322, %v363
        %v371 = vmul.f32 %v322, %v367
        %v372 = vmul.f32 %v326, %v355
        %v373 = vmul.f32 %v326, %v359
        %v374 = vmul.f32 %v326, %v363
        %v375 = vmul.f32 %v326, %v367
        %v376 = vmul.f32 %v330, %v355
        %v377 = vmul.f32 %v330, %v359
        %v378 = vmul.f32 %v330, %v363
        %v379 = vmul.f32 %v330, %v367
        %v380 = vadd.f32 %v308, %v368
        %v381 = vadd.f32 %v309, %v369
        %v382 = vadd.f32 %v310, %v370
        %v383 = vadd.f32 %v311, %v371
        %v384 = vadd.f32 %v312, %v372
        %v385 = vadd.f32 %v313, %v373
        %v386 = vadd.f32 %v314, %v374
        %v387 = vadd.f32 %v315, %v375
        %v388 = vadd.f32 %v316, %v376
        %v389 = vadd.f32 %v317, %v377
        %v390 = vadd.f32 %v318, %v378
        %v391 = vadd.f32 %v319, %v379
        %392 = vset.pattern.permute.xlu0 3
        %393 = vperm.xlu0 %392, %v179
        %v394 = vpop.permute.xlu0 %393
        %396 = vset.pattern.permute.xlu0 3
        %397 = vperm.xlu0 %396, %v180
        %v398 = vpop.permute.xlu0 %397
        %400 = vset.pattern.permute.xlu0 3
        %401 = vperm.xlu0 %400, %v181
        %v402 = vpop.permute.xlu0 %401
        %v404 = vlaneseq
        %v405 = vshrl.u32 %v404, 7
        %v406 = vsub.s32 3, %v405
        %v407 = vrot.slane %v177, %v406
        %v408 = vlaneseq
        %v409 = vshrl.u32 %v408, 7
        %v410 = vsub.s32 7, %v409
        %v411 = vrot.slane %v177, %v410
        %v412 = vlaneseq
        %v413 = vshrl.u32 %v412, 7
        %v414 = vsub.s32 3, %v413
        %v415 = vrot.slane %v178, %v414
        %v416 = vlaneseq
        %v417 = vshrl.u32 %v416, 7
        %v418 = vsub.s32 7, %v417
        %v419 = vrot.slane %v178, %v418
        %v424 = vlaneseq
        %v425 = vshrl.u32 %v424, 7
        %v426 = vsub.s32 3, %v425
        %v427 = vrot.slane %v407, %v426
        %v428 = vlaneseq
        %v429 = vshrl.u32 %v428, 7
        %v430 = vsub.s32 3, %v429
        %v431 = vrot.slane %v411, %v430
        %v432 = vlaneseq
        %v433 = vshrl.u32 %v432, 7
        %v434 = vsub.s32 3, %v433
        %v435 = vrot.slane %v415, %v434
        %v436 = vlaneseq
        %v437 = vshrl.u32 %v436, 7
        %v438 = vsub.s32 3, %v437
        %v439 = vrot.slane %v419, %v438
        %v440 = vmul.f32 %v394, %v427
        %v441 = vmul.f32 %v394, %v431
        %v442 = vmul.f32 %v394, %v435
        %v443 = vmul.f32 %v394, %v439
        %v444 = vmul.f32 %v398, %v427
        %v445 = vmul.f32 %v398, %v431
        %v446 = vmul.f32 %v398, %v435
        %v447 = vmul.f32 %v398, %v439
        %v448 = vmul.f32 %v402, %v427
        %v449 = vmul.f32 %v402, %v431
        %v450 = vmul.f32 %v402, %v435
        %v451 = vmul.f32 %v402, %v439
        %v452 = vadd.f32 %v380, %v440
        %v453 = vadd.f32 %v381, %v441
        %v454 = vadd.f32 %v382, %v442
        %v455 = vadd.f32 %v383, %v443
        %v456 = vadd.f32 %v384, %v444
        %v457 = vadd.f32 %v385, %v445
        %v458 = vadd.f32 %v386, %v446
        %v459 = vadd.f32 %v387, %v447
        %v460 = vadd.f32 %v388, %v448
        %v461 = vadd.f32 %v389, %v449
        %v462 = vadd.f32 %v390, %v450
        %v463 = vadd.f32 %v391, %v451
        %464 = vset.pattern.permute.xlu0 4
        %465 = vperm.xlu0 %464, %v179
        %v466 = vpop.permute.xlu0 %465
        %468 = vset.pattern.permute.xlu0 4
        %469 = vperm.xlu0 %468, %v180
        %v470 = vpop.permute.xlu0 %469
        %472 = vset.pattern.permute.xlu0 4
        %473 = vperm.xlu0 %472, %v181
        %v474 = vpop.permute.xlu0 %473
        %v476 = vadd.f32 %v452, %v466
        %v477 = vadd.f32 %v453, %v466
        %v478 = vadd.f32 %v454, %v466
        %v479 = vadd.f32 %v455, %v466
        %v480 = vadd.f32 %v456, %v470
        %v481 = vadd.f32 %v457, %v470
        %v482 = vadd.f32 %v458, %v470
        %v483 = vadd.f32 %v459, %v470
        %v484 = vadd.f32 %v460, %v474
        %v485 = vadd.f32 %v461, %v474
        %v486 = vadd.f32 %v462, %v474
        %v487 = vadd.f32 %v463, %v474
        %488 = vset.pattern.permute.xlu0 5
        %489 = vperm.xlu0 %488, %v179
        %v490 = vpop.permute.xlu0 %489
        %492 = vset.pattern.permute.xlu0 5
        %493 = vperm.xlu0 %492, %v180
        %v494 = vpop.permute.xlu0 %493
        %496 = vset.pattern.permute.xlu0 5
        %497 = vperm.xlu0 %496, %v181
        %v498 = vpop.permute.xlu0 %497
        %v500 = vmul.f32 %v476, %v490
        %v501 = vmul.f32 %v477, %v490
        %v502 = vmul.f32 %v478, %v490
        %v503 = vmul.f32 %v479, %v490
        %v504 = vmul.f32 %v480, %v494
        %v505 = vmul.f32 %v481, %v494
        %v506 = vmul.f32 %v482, %v494
        %v507 = vmul.f32 %v483, %v494
        %v508 = vmul.f32 %v484, %v498
        %v509 = vmul.f32 %v485, %v498
        %v510 = vmul.f32 %v486, %v498
        %v511 = vmul.f32 %v487, %v498
        %v512 = vadd.f32 %v500, %v504
        %v513 = vadd.f32 %v512, %v508
        %v514 = vrot.slane %v513, 4
        %v515 = vadd.f32 %v513, %v514
        %v516 = vrot.slane %v515, 2
        %v517 = vadd.f32 %v515, %v516
        %v518 = vrot.slane %v517, 1
        %v519 = vadd.f32 %v517, %v518
        %v520 = vadd.f32 %v501, %v505
        %v521 = vadd.f32 %v520, %v509
        %v522 = vrot.slane %v521, 4
        %v523 = vadd.f32 %v521, %v522
        %v524 = vrot.slane %v523, 2
        %v525 = vadd.f32 %v523, %v524
        %v526 = vrot.slane %v525, 1
        %v527 = vadd.f32 %v525, %v526
        %v528 = vadd.f32 %v502, %v506
        %v529 = vadd.f32 %v528, %v510
        %v530 = vrot.slane %v529, 4
        %v531 = vadd.f32 %v529, %v530
        %v532 = vrot.slane %v531, 2
        %v533 = vadd.f32 %v531, %v532
        %v534 = vrot.slane %v533, 1
        %v535 = vadd.f32 %v533, %v534
        %v536 = vadd.f32 %v503, %v507
        %v537 = vadd.f32 %v536, %v511
        %v538 = vrot.slane %v537, 4
        %v539 = vadd.f32 %v537, %v538
        %v540 = vrot.slane %v539, 2
        %v541 = vadd.f32 %v539, %v540
        %v542 = vrot.slane %v541, 1
        %v543 = vadd.f32 %v541, %v542
        %545 = vset.pattern.permute.xlu0 6
        %546 = vperm.xlu0 %545, %v182
        %v547 = vpop.permute.xlu0 %546
        %v549 = vadd.f32 %v519, %v547
        %v550 = vadd.f32 %v527, %v547
        %v551 = vadd.f32 %v535, %v547
        %v552 = vadd.f32 %v543, %v547
        %v553 = vxor.u32 %v549, 2147483648
        %v554 = vxor.u32 %v550, 2147483648
        %v555 = vxor.u32 %v551, 2147483648
        %v556 = vxor.u32 %v552, 2147483648
        %v557 = vmul.f32 %v553, 1.442695
        %v558 = vpow.pop %v557
        %v559 = vmul.f32 %v554, 1.442695
        %v560 = vpow.pop %v559
        %v561 = vmul.f32 %v555, 1.442695
        %v562 = vpow.pop %v561
        %v563 = vmul.f32 %v556, 1.442695
        %v564 = vpow.pop %v563
        %v565 = vadd.f32 %v558, 1.0
        %v566 = vadd.f32 %v560, 1.0
        %v567 = vadd.f32 %v562, 1.0
        %v568 = vadd.f32 %v564, 1.0
        %v569 = vrcp.pop %v565
        %v570 = vmul.f32 1.0, %v569
        %v571 = vrcp.pop %v566
        %v572 = vmul.f32 1.0, %v571
        %v573 = vrcp.pop %v567
        %v574 = vmul.f32 1.0, %v573
        %v575 = vrcp.pop %v568
        %v576 = vmul.f32 1.0, %v575
        %v581 = vcombine.low %v570, %v572
        %v582 = vcombine.low %v574, %v576
        %v584 = vunpack.c.l.s4 1966171168
        %v585 = vunpack.c.0.s8 %v584
        %v586 = vlaneseq
        %v587 = vshrl.u32 %v586, 7
        %v588 = vsub.s32 %v585, %v587
        %v589 = vrot.slane %v581, %v588
        %v591 = vunpack.c.l.s4 1966171168
        %v592 = vunpack.c.0.s8 %v591
        %v593 = vlaneseq
        %v594 = vshrl.u32 %v593, 7
        %v595 = vsub.s32 %v592, %v594
        %v596 = vrot.slane %v582, %v595
        %v597 = vcombine.low %v589, %v596
        %v599 = vunpack.c.l.s4 1966171168
        %v600 = vunpack.c.0.s8 %v599
        %v601 = vlaneseq
        %v602 = vshrl.u32 %v601, 7
        %v603 = vsub.s32 %v600, %v602
        %v604 = vrot.slane %v597, %v603
        %v606 = vlaneseq
        %vm607 = vcmp.ge.s32.totalorder %v606, 0
        %vm608 = vcmp.lt.s32.totalorder %v606, 512
        %vm609 = vmand %vm607, %vm608
        %610 = vst.msk [vmem:[%s174] ss:$2 sm:$0xf] %vm609, %v604
        %v611 = vsub.f32 1.0, %v570
        %v612 = vsub.f32 1.0, %v572
        %v613 = vsub.f32 1.0, %v574
        %v614 = vsub.f32 1.0, %v576
        %v619 = vcombine.low %v611, %v612
        %v620 = vcombine.low %v613, %v614
        %v622 = vunpack.c.l.s4 1966171168
        %v623 = vunpack.c.0.s8 %v622
        %v624 = vlaneseq
        %v625 = vshrl.u32 %v624, 7
        %v626 = vsub.s32 %v623, %v625
        %v627 = vrot.slane %v619, %v626
        %v629 = vunpack.c.l.s4 1966171168
        %v630 = vunpack.c.0.s8 %v629
        %v631 = vlaneseq
        %v632 = vshrl.u32 %v631, 7
        %v633 = vsub.s32 %v630, %v632
        %v634 = vrot.slane %v620, %v633
        %v635 = vcombine.low %v627, %v634
        %v637 = vunpack.c.l.s4 1966171168
        %v638 = vunpack.c.0.s8 %v637
        %v639 = vlaneseq
        %v640 = vshrl.u32 %v639, 7
        %v641 = vsub.s32 %v638, %v640
        %v642 = vrot.slane %v635, %v641
        %s644 = scalar_lea.vmem %s174, 1 [#allocation7]
        %645 = vst.msk [vmem:[%s644] ss:$2 sm:$0xf] %vm609, %v642
        %s646 = sand.u32 %s75, 1
        %s647 = scalar_lea.sflag [#allocation4], %s646
        %s648 = sand.u32 %s75, 1
        %s649 = smul.addr %s648, 8
        %s650 = scalar_lea.vmem [#allocation7], %s649
        // Predicated region
        $region37: #{tpu_custom_call.1} parent=27 // pred_check
          %p651 = pneg %p85
        $region38: #{tpu_custom_call.1} parent=27 // pred_check_branch
          %653 = sbr.rel (%p651) target = $region40
        $region39: #{tpu_custom_call.1} parent=27 // pred_region
          %s654 = smul.u32 4, %s20
          %s656 = ssub.s32 128, 128
          %657 = vsyncadd %s647, %s656
          %s658 = smul.addr %s654, 32
          %s659 = scalar_lea.hbm %s2, %s658
          %s661 = sshll.u32 %s650, 4
          %s662 = int_to_ptr.vmem [resolvable:$true] %s661
          %664 = dma.vmem_to_hbm [thread:$0]  %s662, 128, %s659, %s647
        $region40: #{tpu_custom_call.1} parent=27 // pred_fallthru
          _
      $region28: #{tpu_custom_call.1} parent=5 // pred_fallthru
        _
      %p665 = scmp.le.s32.totalorder 2, %s15
      // Predicated region
      $region41: #{tpu_custom_call.1} parent=5 // pred_check
        %p666 = pneg %p665
      $region42: #{tpu_custom_call.1} parent=5 // pred_check_branch
        %668 = sbr.rel (%p666) target = $region44
      $region43: #{tpu_custom_call.1} parent=5 // pred_region
        %s669 = ssub.s32 %s15, 2
        // Predicated region
        $region45: #{tpu_custom_call.1} parent=43 // pred_check
          %p670 = pneg %p91
        $region46: #{tpu_custom_call.1} parent=43 // pred_check_branch
          %672 = sbr.rel (%p670) target = $region48
        $region47: #{tpu_custom_call.1} parent=43 // pred_region
          %s673 = sand.u32 %s76, 1
          %s674 = scalar_lea.sflag [#allocation4], %s673
          %s675 = sand.u32 %s76, 1
          %s676 = smul.addr %s675, 8
          %s677 = scalar_lea.vmem [#allocation7], %s676
          %678 = dma.done %s674, 128
        $region48: #{tpu_custom_call.1} parent=43 // pred_fallthru
          _
      $region44: #{tpu_custom_call.1} parent=5 // pred_fallthru
        _
    $region6: #{tpu_custom_call.1} parent=1 // loop_footer
      %s19 = sadd.s32 1, %s15
    $region7: #{tpu_custom_call.1} parent=1 // loop_footer_branch
      %14 = sbr.rel target = $region3
    $region8: #{tpu_custom_call.1} parent=1 // loop_exit
      _
    %679 = vsyncpa [#allocation3], 1
    %s680 = scalar_lea.sflag [#allocation3], 1
    %681 = vsyncpa %s680, 1
    %682 = vsyncpa [#allocation6], 1
    %683 = vsyncpa [#allocation4], 1
    %s684 = scalar_lea.sflag [#allocation4], 1
    %685 = vsyncpa %s684, 1

</llo_original>
